<compile_context>
chip_gen: v7x
topology: tpu7x:2x2x1
jax: 0.10.0
libtpu: 0.0.40
codegen_flags: <defaults>
</compile_context>

<pallas_src>
import jax
import jax.numpy as jnp
from jax import lax
from jax.experimental import pallas as pl
from jax.experimental.pallas import tpu as pltpu

# ---- problem sizes (small, consistent with the module) -----------------------
N, C_IN, H, W = 2, 4, 16, 16
C_OUT = 8
RATIO = 2
C_MID = C_OUT // RATIO            # 4
HP, WP = H // 2, W // 2           # 8, 8  (after 3x3/stride-2/pad-1 maxpool)
HW = H * W                        # 256 (lane-dense last dim)
HPWP = HP * WP                    # 64
NC_IN = N * C_IN                  # 8  (batch fused onto sublanes)
NC_MID = N * C_MID                # 8
NC_OUT = N * C_OUT                # 16
BN_EPS = 1e-5
NEG_BIG = -1e30                   # maxpool pad sentinel (inputs >= 0 after ReLU)


def airblock_kernel(x_ref, w1_ref, b1_ref, w2_ref, b2_ref, w3_ref, b3_ref,
                    sdown_ref, kup_ref, o_ref):
    x = x_ref[...]                                            # (NC_IN, 256)

    # ---- stage 1: 1x1 conv (BN scale folded, batch block-diag) + bias + ReLU -
    y1 = jnp.dot(w1_ref[...], x, preferred_element_type=jnp.float32)
    y1 = jnp.maximum(y1 + b1_ref[...], 0.0)                   # (NC_MID, 256)

    # ---- stage 2: 3x3 maxpool, stride 2, pad 1 (separable, flat layout) ------
    pos = lax.broadcasted_iota(jnp.int32, (NC_MID, HW), 1)
    h16 = pos >> 4                                            # row index
    w16 = pos & (W - 1)                                       # col index

    # vertical pass: max over dy in {-1, 0, +1}
    vmax = y1
    vmax = jnp.maximum(
        vmax, jnp.where(h16 >= 1, pltpu.roll(y1, W, axis=1), NEG_BIG))
    vmax = jnp.maximum(
        vmax, jnp.where(h16 <= H - 2, pltpu.roll(y1, HW - W, axis=1), NEG_BIG))
    # horizontal pass: max over dx in {-1, 0, +1}
    hmax = vmax
    hmax = jnp.maximum(
        hmax, jnp.where(w16 >= 1, pltpu.roll(vmax, 1, axis=1), NEG_BIG))
    hmax = jnp.maximum(
        hmax, jnp.where(w16 <= W - 2, pltpu.roll(vmax, HW - 1, axis=1), NEG_BIG))
    # stride-2 subsample of all (batch x channel) rows at once
    pooled = jnp.dot(hmax, sdown_ref[...],
                     preferred_element_type=jnp.float32)      # (NC_MID, 64)

    # ---- stage 3: 3x3 conv (pad 1, BN folded) as ONE matmul over 9-tap stack -
    pos8 = lax.broadcasted_iota(jnp.int32, (NC_MID, HPWP), 1)
    h8 = pos8 >> 3
    w8 = pos8 & (WP - 1)
    # boundary masks hoisted out of the tap loop (computed once, AND'd per tap)
    row_ok = (h8 >= 1, None, h8 <= HP - 2)                    # dy = -1, 0, +1
    col_ok = (w8 >= 1, None, w8 <= WP - 2)                    # dx = -1, 0, +1

    taps = []
    for dy in (-1, 0, 1):
        for dx in (-1, 0, 1):
            k = dy * WP + dx
            if k == 0:
                taps.append(pooled)
                continue
            r = row_ok[dy + 1]
            c = col_ok[dx + 1]
            valid = r if c is None else (c if r is None else (r & c))
            taps.append(jnp.where(valid,
                                  pltpu.roll(pooled, (-k) % HPWP, axis=1), 0.0))
    tap_stack = jnp.concatenate(taps, axis=0)                 # (9*NC_MID, 64)
    acc = jnp.dot(w2_ref[...], tap_stack,
                  preferred_element_type=jnp.float32)         # (NC_MID, 64)
    y2 = jnp.maximum(acc + b2_ref[...], 0.0)

    # ---- stage 4: bilinear x2 upsample (align_corners=True) as one matmul ----
    up = jnp.dot(y2, kup_ref[...],
                 preferred_element_type=jnp.float32)          # (NC_MID, 256)

    # ---- stage 5: 1x1 conv (BN scale folded) + bias, then sigmoid ------------
    z = jnp.dot(w3_ref[...], up,
                preferred_element_type=jnp.float32) + b3_ref[...]
    o_ref[...] = jax.nn.sigmoid(z)                            # (NC_OUT, 256)


# ---- host-side constant matrices, parameter setup, pallas_call wrapper -------
def _downsample_matrix():
    d = jnp.zeros((HP, H), jnp.float32)
    return d.at[jnp.arange(HP), 2 * jnp.arange(HP)].set(1.0)


def _upsample_matrix():
    # align_corners=True: src = dst * (HP - 1) / (H - 1)
    dst = jnp.arange(H, dtype=jnp.float32)
    src = dst * (HP - 1) / (H - 1)
    i0 = jnp.floor(src).astype(jnp.int32)
    i1 = jnp.minimum(i0 + 1, HP - 1)
    frac = src - i0.astype(jnp.float32)
    u = jnp.zeros((H, HP), jnp.float32)
    u = u.at[jnp.arange(H), i0].add(1.0 - frac)
    u = u.at[jnp.arange(H), i1].add(frac)
    return u


def init_params(key):
    ks = jax.random.split(key, 6)

    def bn_fold(k, c):
        kg, kb, km, kv = jax.random.split(k, 4)
        gamma = 1.0 + 0.1 * jax.random.normal(kg, (c,), jnp.float32)
        beta = 0.1 * jax.random.normal(kb, (c,), jnp.float32)
        mean = 0.1 * jax.random.normal(km, (c,), jnp.float32)
        var = 0.5 + jax.random.uniform(kv, (c,), jnp.float32)
        scale = gamma / jnp.sqrt(var + BN_EPS)
        bias = beta - mean * scale
        return scale, bias

    w1 = 0.4 * jax.random.normal(ks[0], (C_MID, C_IN), jnp.float32)
    s1, b1 = bn_fold(ks[1], C_MID)
    w2 = 0.2 * jax.random.normal(ks[2], (C_MID, C_MID, 3, 3), jnp.float32)
    s2, b2 = bn_fold(ks[3], C_MID)
    w3 = 0.4 * jax.random.normal(ks[4], (C_OUT, C_MID), jnp.float32)
    s3, b3 = bn_fold(ks[5], C_OUT)
    return (w1, s1, b1, w2, s2, b2, w3, s3, b3)


def prepare_params(params):
    """One-time host-side prep: fold BN scale into conv weights, build
    batch-block-diagonal weight matrices and the Kronecker selection /
    interpolation matrices, tile biases for the fused (N*C, HW) layout."""
    w1, s1, b1, w2, s2, b2, w3, s3, b3 = params
    eye_n = jnp.eye(N, dtype=jnp.float32)

    w1_eff = w1 * s1[:, None]                                  # (C_MID, C_IN)
    w2_eff = w2 * s2[:, None, None, None]                      # (C_MID, C_MID, 3, 3)
    # tap-major layout: w2_taps[ky*3+kx] = w2_eff[:, :, ky, kx]  (C_out, C_in)
    w2_taps = jnp.transpose(w2_eff, (2, 3, 0, 1)).reshape(9, C_MID, C_MID)
    w3_eff = w3 * s3[:, None]                                  # (C_OUT, C_MID)

    # batch-block-diagonal weights for the sublane-fused layout
    w1_blk = jnp.kron(eye_n, w1_eff)                           # (NC_MID, NC_IN)
    w2_blk = jnp.concatenate(                                  # (NC_MID, 9*NC_MID)
        [jnp.kron(eye_n, w2_taps[t]) for t in range(9)], axis=1)
    w3_blk = jnp.kron(eye_n, w3_eff)                           # (NC_OUT, NC_MID)

    b1_t = jnp.tile(b1.reshape(C_MID, 1), (N, 1))              # (NC_MID, 1)
    b2_t = jnp.tile(b2.reshape(C_MID, 1), (N, 1))              # (NC_MID, 1)
    b3_t = jnp.tile(b3.reshape(C_OUT, 1), (N, 1))              # (NC_OUT, 1)

    dmat = _downsample_matrix()                                # (HP, H)
    umat = _upsample_matrix()                                  # (H, HP)
    # keep both in f32: bilinear fractions are not bf16-exact
    sdown = jnp.kron(dmat, dmat).T                             # (256, 64) selector
    kup = jnp.kron(umat, umat).T                               # (64, 256) interp
    return (w1_blk, b1_t, w2_blk, b2_t, w3_blk, b3_t, sdown, kup)


def air_block_forward(x, prep):
    (w1_blk, b1_t, w2_blk, b2_t, w3_blk, b3_t, sdown, kup) = prep
    x_flat = x.reshape(NC_IN, HW)                              # batch on sublanes

    # Single grid-less invocation: whole arrays land in VMEM (well under 1 MiB),
    # no per-grid-step pipeline overhead, no duplicated constant DMA.
    out_flat = pl.pallas_call(
        airblock_kernel,
        out_shape=jax.ShapeDtypeStruct((NC_OUT, HW), jnp.float32),
    )(x_flat, w1_blk, b1_t, w2_blk, b2_t, w3_blk, b3_t, sdown, kup)
    return out_flat.reshape(N, C_OUT, H, W)


def ref_forward(x, params):
    """Pure-JAX reference matching AirBlock.forward (BN folded, eval mode)."""
    w1, s1, b1, w2, s2, b2, w3, s3, b3 = params
    dn = ('NCHW', 'OIHW', 'NCHW')
    y = lax.conv_general_dilated(x, w1[:, :, None, None], (1, 1), 'VALID',
                                 dimension_numbers=dn)
    y = jnp.maximum(y * s1[None, :, None, None] + b1[None, :, None, None], 0.0)
    y = lax.reduce_window(y, -jnp.inf, lax.max, (1, 1, 3, 3), (1, 1, 2, 2),
                          ((0, 0), (0, 0), (1, 1), (1, 1)))
    y = lax.conv_general_dilated(y, w2, (1, 1), ((1, 1), (1, 1)),
                                 dimension_numbers=dn)
    y = jnp.maximum(y * s2[None, :, None, None] + b2[None, :, None, None], 0.0)
    umat = _upsample_matrix()
    y = jnp.einsum('ah,nchw->ncaw', umat, y)
    y = jnp.einsum('bw,ncaw->ncab', umat, y)
    y = lax.conv_general_dilated(y, w3[:, :, None, None], (1, 1), 'VALID',
                                 dimension_numbers=dn)
    y = y * s3[None, :, None, None] + b3[None, :, None, None]
    return 1.0 / (1.0 + jnp.exp(-y))


if __name__ == "__main__":
    key = jax.random.PRNGKey(0)
    kx, kp = jax.random.split(key)
    x = jax.random.normal(kx, (N, C_IN, H, W), jnp.float32)
    params = init_params(kp)
    prep = prepare_params(params)

    out = air_block_forward(x, prep)
    out = jax.block_until_ready(out)

    ref = jax.block_until_ready(ref_forward(x, params))
    assert out.shape == (N, C_OUT, H, W), out.shape
    err = float(jnp.max(jnp.abs(out - ref)))
    assert err < 1e-4, f"max abs err {err}"
    print("KERNEL_OK")
</pallas_src>

<mosaic_0001>
module attributes {stable_mosaic.version = 11 : i64} {
  func.func @airblock_kernel(%arg0: memref<8x256xf32, #tpu.memory_space<vmem>>, %arg1: memref<8x8xf32, #tpu.memory_space<vmem>>, %arg2: memref<8x1xf32, #tpu.memory_space<vmem>>, %arg3: memref<8x72xf32, #tpu.memory_space<vmem>>, %arg4: memref<8x1xf32, #tpu.memory_space<vmem>>, %arg5: memref<16x8xf32, #tpu.memory_space<vmem>>, %arg6: memref<16x1xf32, #tpu.memory_space<vmem>>, %arg7: memref<256x64xf32, #tpu.memory_space<vmem>>, %arg8: memref<64x256xf32, #tpu.memory_space<vmem>>, %arg9: memref<16x256xf32, #tpu.memory_space<vmem>>) attributes {dimension_semantics = [], scalar_prefetch = 0 : i64, scratch_operands = 0 : i64, tpu.core_type = #tpu.core_type<tc>} {
    %c0 = arith.constant 0 : index
    %c0_0 = arith.constant 0 : index
    %0 = vector.load %arg0[%c0, %c0_0] : memref<8x256xf32, #tpu.memory_space<vmem>>, vector<8x256xf32>
    %c0_1 = arith.constant 0 : index
    %c0_2 = arith.constant 0 : index
    %1 = vector.load %arg1[%c0_1, %c0_2] : memref<8x8xf32, #tpu.memory_space<vmem>>, vector<8x8xf32>
    %cst = arith.constant dense<0.000000e+00> : vector<8x256xf32>
    %2 = tpu.matmul %1, %0, %cst {dimension_numbers = #tpu.dot_dimension_numbers<[1], [0], [0], [1], [0, 0, 1, 1], [], []>} : vector<8x8xf32>, vector<8x256xf32>, vector<8x256xf32> -> vector<8x256xf32>
    %c0_3 = arith.constant 0 : index
    %c0_4 = arith.constant 0 : index
    %3 = vector.load %arg2[%c0_3, %c0_4] : memref<8x1xf32, #tpu.memory_space<vmem>>, vector<8x1xf32>
    %4 = vector.broadcast %3 : vector<8x1xf32> to vector<8x256xf32>
    %5 = arith.addf %2, %4 : vector<8x256xf32>
    %cst_5 = arith.constant 0.000000e+00 : f32
    %6 = vector.broadcast %cst_5 : f32 to vector<8x256xf32>
    %7 = arith.maximumf %5, %6 : vector<8x256xf32>
    %8 = tpu.iota {dimensions = array<i32: 1>} : vector<8x256xi32>
    %c4_i32 = arith.constant 4 : i32
    %9 = vector.broadcast %c4_i32 : i32 to vector<8x256xi32>
    %10 = arith.shrsi %8, %9 : vector<8x256xi32>
    %c15_i32 = arith.constant 15 : i32
    %11 = vector.broadcast %c15_i32 : i32 to vector<8x256xi32>
    %12 = arith.andi %8, %11 : vector<8x256xi32>
    %c1_i32 = arith.constant 1 : i32
    %13 = vector.broadcast %c1_i32 : i32 to vector<8x256xi32>
    %14 = arith.cmpi sge, %10, %13 : vector<8x256xi32>
    %c16_i32 = arith.constant 16 : i32
    %15 = tpu.dynamic_rotate %7 by %c16_i32 dim 1 : vector<8x256xf32>, i32 -> vector<8x256xf32>
    %cst_6 = arith.constant -1.000000e+30 : f32
    %16 = vector.broadcast %cst_6 : f32 to vector<8x256xf32>
    %17 = arith.select %14, %15, %16 : vector<8x256xi1>, vector<8x256xf32>
    %18 = arith.maximumf %7, %17 : vector<8x256xf32>
    %c14_i32 = arith.constant 14 : i32
    %19 = vector.broadcast %c14_i32 : i32 to vector<8x256xi32>
    %20 = arith.cmpi sle, %10, %19 : vector<8x256xi32>
    %c240_i32 = arith.constant 240 : i32
    %21 = tpu.dynamic_rotate %7 by %c240_i32 dim 1 : vector<8x256xf32>, i32 -> vector<8x256xf32>
    %cst_7 = arith.constant -1.000000e+30 : f32
    %22 = vector.broadcast %cst_7 : f32 to vector<8x256xf32>
    %23 = arith.select %20, %21, %22 : vector<8x256xi1>, vector<8x256xf32>
    %24 = arith.maximumf %18, %23 : vector<8x256xf32>
    %c1_i32_8 = arith.constant 1 : i32
    %25 = vector.broadcast %c1_i32_8 : i32 to vector<8x256xi32>
    %26 = arith.cmpi sge, %12, %25 : vector<8x256xi32>
    %c1_i32_9 = arith.constant 1 : i32
    %27 = tpu.dynamic_rotate %24 by %c1_i32_9 dim 1 : vector<8x256xf32>, i32 -> vector<8x256xf32>
    %cst_10 = arith.constant -1.000000e+30 : f32
    %28 = vector.broadcast %cst_10 : f32 to vector<8x256xf32>
    %29 = arith.select %26, %27, %28 : vector<8x256xi1>, vector<8x256xf32>
    %30 = arith.maximumf %24, %29 : vector<8x256xf32>
    %c14_i32_11 = arith.constant 14 : i32
    %31 = vector.broadcast %c14_i32_11 : i32 to vector<8x256xi32>
    %32 = arith.cmpi sle, %12, %31 : vector<8x256xi32>
    %c255_i32 = arith.constant 255 : i32
    %33 = tpu.dynamic_rotate %24 by %c255_i32 dim 1 : vector<8x256xf32>, i32 -> vector<8x256xf32>
    %cst_12 = arith.constant -1.000000e+30 : f32
    %34 = vector.broadcast %cst_12 : f32 to vector<8x256xf32>
    %35 = arith.select %32, %33, %34 : vector<8x256xi1>, vector<8x256xf32>
    %36 = arith.maximumf %30, %35 : vector<8x256xf32>
    %c0_13 = arith.constant 0 : index
    %c0_14 = arith.constant 0 : index
    %37 = vector.load %arg7[%c0_13, %c0_14] : memref<256x64xf32, #tpu.memory_space<vmem>>, vector<256x64xf32>
    %cst_15 = arith.constant dense<0.000000e+00> : vector<8x64xf32>
    %38 = tpu.matmul %36, %37, %cst_15 {dimension_numbers = #tpu.dot_dimension_numbers<[1], [0], [0], [1], [0, 0, 1, 1], [], []>} : vector<8x256xf32>, vector<256x64xf32>, vector<8x64xf32> -> vector<8x64xf32>
    %39 = tpu.iota {dimensions = array<i32: 1>} : vector<8x64xi32>
    %c3_i32 = arith.constant 3 : i32
    %40 = vector.broadcast %c3_i32 : i32 to vector<8x64xi32>
    %41 = arith.shrsi %39, %40 : vector<8x64xi32>
    %c7_i32 = arith.constant 7 : i32
    %42 = vector.broadcast %c7_i32 : i32 to vector<8x64xi32>
    %43 = arith.andi %39, %42 : vector<8x64xi32>
    %c1_i32_16 = arith.constant 1 : i32
    %44 = vector.broadcast %c1_i32_16 : i32 to vector<8x64xi32>
    %45 = arith.cmpi sge, %41, %44 : vector<8x64xi32>
    %c6_i32 = arith.constant 6 : i32
    %46 = vector.broadcast %c6_i32 : i32 to vector<8x64xi32>
    %47 = arith.cmpi sle, %41, %46 : vector<8x64xi32>
    %c1_i32_17 = arith.constant 1 : i32
    %48 = vector.broadcast %c1_i32_17 : i32 to vector<8x64xi32>
    %49 = arith.cmpi sge, %43, %48 : vector<8x64xi32>
    %c6_i32_18 = arith.constant 6 : i32
    %50 = vector.broadcast %c6_i32_18 : i32 to vector<8x64xi32>
    %51 = arith.cmpi sle, %43, %50 : vector<8x64xi32>
    %52 = arith.andi %45, %49 : vector<8x64xi1>
    %c9_i32 = arith.constant 9 : i32
    %53 = tpu.dynamic_rotate %38 by %c9_i32 dim 1 : vector<8x64xf32>, i32 -> vector<8x64xf32>
    %cst_19 = arith.constant 0.000000e+00 : f32
    %54 = vector.broadcast %cst_19 : f32 to vector<8x64xf32>
    %55 = arith.select %52, %53, %54 : vector<8x64xi1>, vector<8x64xf32>
    %c8_i32 = arith.constant 8 : i32
    %56 = tpu.dynamic_rotate %38 by %c8_i32 dim 1 : vector<8x64xf32>, i32 -> vector<8x64xf32>
    %cst_20 = arith.constant 0.000000e+00 : f32
    %57 = vector.broadcast %cst_20 : f32 to vector<8x64xf32>
    %58 = arith.select %45, %56, %57 : vector<8x64xi1>, vector<8x64xf32>
    %59 = arith.andi %45, %51 : vector<8x64xi1>
    %c7_i32_21 = arith.constant 7 : i32
    %60 = tpu.dynamic_rotate %38 by %c7_i32_21 dim 1 : vector<8x64xf32>, i32 -> vector<8x64xf32>
    %cst_22 = arith.constant 0.000000e+00 : f32
    %61 = vector.broadcast %cst_22 : f32 to vector<8x64xf32>
    %62 = arith.select %59, %60, %61 : vector<8x64xi1>, vector<8x64xf32>
    %c1_i32_23 = arith.constant 1 : i32
    %63 = tpu.dynamic_rotate %38 by %c1_i32_23 dim 1 : vector<8x64xf32>, i32 -> vector<8x64xf32>
    %cst_24 = arith.constant 0.000000e+00 : f32
    %64 = vector.broadcast %cst_24 : f32 to vector<8x64xf32>
    %65 = arith.select %49, %63, %64 : vector<8x64xi1>, vector<8x64xf32>
    %c63_i32 = arith.constant 63 : i32
    %66 = tpu.dynamic_rotate %38 by %c63_i32 dim 1 : vector<8x64xf32>, i32 -> vector<8x64xf32>
    %cst_25 = arith.constant 0.000000e+00 : f32
    %67 = vector.broadcast %cst_25 : f32 to vector<8x64xf32>
    %68 = arith.select %51, %66, %67 : vector<8x64xi1>, vector<8x64xf32>
    %69 = arith.andi %47, %49 : vector<8x64xi1>
    %c57_i32 = arith.constant 57 : i32
    %70 = tpu.dynamic_rotate %38 by %c57_i32 dim 1 : vector<8x64xf32>, i32 -> vector<8x64xf32>
    %cst_26 = arith.constant 0.000000e+00 : f32
    %71 = vector.broadcast %cst_26 : f32 to vector<8x64xf32>
    %72 = arith.select %69, %70, %71 : vector<8x64xi1>, vector<8x64xf32>
    %c56_i32 = arith.constant 56 : i32
    %73 = tpu.dynamic_rotate %38 by %c56_i32 dim 1 : vector<8x64xf32>, i32 -> vector<8x64xf32>
    %cst_27 = arith.constant 0.000000e+00 : f32
    %74 = vector.broadcast %cst_27 : f32 to vector<8x64xf32>
    %75 = arith.select %47, %73, %74 : vector<8x64xi1>, vector<8x64xf32>
    %76 = arith.andi %47, %51 : vector<8x64xi1>
    %c55_i32 = arith.constant 55 : i32
    %77 = tpu.dynamic_rotate %38 by %c55_i32 dim 1 : vector<8x64xf32>, i32 -> vector<8x64xf32>
    %cst_28 = arith.constant 0.000000e+00 : f32
    %78 = vector.broadcast %cst_28 : f32 to vector<8x64xf32>
    %79 = arith.select %76, %77, %78 : vector<8x64xi1>, vector<8x64xf32>
    %80 = tpu.concatenate %55, %58, %62, %65, %38, %68, %72, %75, %79 in 0 : vector<8x64xf32>, vector<8x64xf32>, vector<8x64xf32>, vector<8x64xf32>, vector<8x64xf32>, vector<8x64xf32>, vector<8x64xf32>, vector<8x64xf32>, vector<8x64xf32> -> vector<72x64xf32>
    %c0_29 = arith.constant 0 : index
    %c0_30 = arith.constant 0 : index
    %81 = vector.load %arg3[%c0_29, %c0_30] : memref<8x72xf32, #tpu.memory_space<vmem>>, vector<8x72xf32>
    %cst_31 = arith.constant dense<0.000000e+00> : vector<8x64xf32>
    %82 = tpu.matmul %81, %80, %cst_31 {dimension_numbers = #tpu.dot_dimension_numbers<[1], [0], [0], [1], [0, 0, 1, 1], [], []>} : vector<8x72xf32>, vector<72x64xf32>, vector<8x64xf32> -> vector<8x64xf32>
    %c0_32 = arith.constant 0 : index
    %c0_33 = arith.constant 0 : index
    %83 = vector.load %arg4[%c0_32, %c0_33] : memref<8x1xf32, #tpu.memory_space<vmem>>, vector<8x1xf32>
    %84 = vector.broadcast %83 : vector<8x1xf32> to vector<8x64xf32>
    %85 = arith.addf %82, %84 : vector<8x64xf32>
    %cst_34 = arith.constant 0.000000e+00 : f32
    %86 = vector.broadcast %cst_34 : f32 to vector<8x64xf32>
    %87 = arith.maximumf %85, %86 : vector<8x64xf32>
    %c0_35 = arith.constant 0 : index
    %c0_36 = arith.constant 0 : index
    %88 = vector.load %arg8[%c0_35, %c0_36] : memref<64x256xf32, #tpu.memory_space<vmem>>, vector<64x256xf32>
    %cst_37 = arith.constant dense<0.000000e+00> : vector<8x256xf32>
    %89 = tpu.matmul %87, %88, %cst_37 {dimension_numbers = #tpu.dot_dimension_numbers<[1], [0], [0], [1], [0, 0, 1, 1], [], []>} : vector<8x64xf32>, vector<64x256xf32>, vector<8x256xf32> -> vector<8x256xf32>
    %c0_38 = arith.constant 0 : index
    %c0_39 = arith.constant 0 : index
    %90 = vector.load %arg5[%c0_38, %c0_39] : memref<16x8xf32, #tpu.memory_space<vmem>>, vector<16x8xf32>
    %cst_40 = arith.constant dense<0.000000e+00> : vector<16x256xf32>
    %91 = tpu.matmul %90, %89, %cst_40 {dimension_numbers = #tpu.dot_dimension_numbers<[1], [0], [0], [1], [0, 0, 1, 1], [], []>} : vector<16x8xf32>, vector<8x256xf32>, vector<16x256xf32> -> vector<16x256xf32>
    %c0_41 = arith.constant 0 : index
    %c0_42 = arith.constant 0 : index
    %92 = vector.load %arg6[%c0_41, %c0_42] : memref<16x1xf32, #tpu.memory_space<vmem>>, vector<16x1xf32>
    %93 = vector.broadcast %92 : vector<16x1xf32> to vector<16x256xf32>
    %94 = arith.addf %91, %93 : vector<16x256xf32>
    %95 = arith.negf %94 : vector<16x256xf32>
    %96 = math.exp %95 : vector<16x256xf32>
    %cst_43 = arith.constant 1.000000e+00 : f32
    %97 = vector.broadcast %cst_43 : f32 to vector<16x256xf32>
    %98 = arith.addf %97, %96 : vector<16x256xf32>
    %99 = arith.divf %97, %98 : vector<16x256xf32>
    %c0_44 = arith.constant 0 : index
    %c0_45 = arith.constant 0 : index
    %100 = vector.load %arg9[%c0_44, %c0_45] : memref<16x256xf32, #tpu.memory_space<vmem>>, vector<16x256xf32>
    tpu.vector_store %arg9[%c0_44, %c0_45], %99 {strides = array<i32>} : memref<16x256xf32, #tpu.memory_space<vmem>>, vector<16x256xf32>,
    return
  }
}

</mosaic_0001>

<llo_original>
// kernel: tpu_custom_call.1
$region0: #{tpu_custom_call.1}
  #allocation0 [shape = 'u32[]', space=smem, size = 0x4, offset = 0x4, fixed_abs, tag = 'smem constant byte address 0x4 - core index']
  #allocation1 [shape = 'u32[144,128]{1,0:T(1,128)}', space=vmem, size = 0x12000, scoped, tag = 'internal scratch']
  %s0 = inlined_call_operand.vmem [shape: f32[8,256], index: 0, kind: input, shape index: {}]
  %s1 = inlined_call_operand.vmem [shape: f32[8,8], index: 1, kind: input, shape index: {}]
  %s2 = inlined_call_operand.vmem [shape: f32[8,1], index: 2, kind: input, shape index: {}]
  %s3 = inlined_call_operand.vmem [shape: f32[8,72], index: 3, kind: input, shape index: {}]
  %s4 = inlined_call_operand.vmem [shape: f32[8,1], index: 4, kind: input, shape index: {}]
  %s5 = inlined_call_operand.vmem [shape: f32[16,8], index: 5, kind: input, shape index: {}]
  %s6 = inlined_call_operand.vmem [shape: f32[16,1], index: 6, kind: input, shape index: {}]
  %s7 = inlined_call_operand.vmem [shape: f32[256,64], index: 7, kind: input, shape index: {}]
  %s8 = inlined_call_operand.vmem [shape: f32[64,256], index: 8, kind: input, shape index: {}]
  %s9 = inlined_call_operand.hbm [shape: f32[16,256], index: 9, kind: output, shape index: {}]
  %s10 = sld [smem:[#allocation0]]
  $region46: #{tpu_custom_call.1} parent=0
    _
  %s12 = ssub.s32 1, %s10
  %s13 = scalar_select 0, %s12, %s10
  $region1: #{tpu_custom_call.1} parent=0
    #allocation2 [shape = 'u8[16384]{0}', space=vmem, size = 0x4000, scoped, tag = 'output window, operand 0, single buffered']
    #allocation3 [shape = 's32[1]{0}', space=sflag, size = 0x4, scoped, tag = 'scoped memory for tpu_custom_call.1']
    %14 = vsyncpa [#allocation3], 0
    // Predicated region
    $region2: #{tpu_custom_call.1} parent=1 // pred_check
      _
    $region3: #{tpu_custom_call.1} parent=1 // pred_check_branch
      %16 = sbr.rel (0) target = $region5
    $region4: #{tpu_custom_call.1} parent=1 // pred_region
      _
    $region5: #{tpu_custom_call.1} parent=1 // pred_fallthru
      _
    // Predicated region
    $region6: #{tpu_custom_call.1} parent=1 // pred_check
      _
    $region7: #{tpu_custom_call.1} parent=1 // pred_check_branch
      %18 = sbr.rel (0) target = $region9
    $region8: #{tpu_custom_call.1} parent=1 // pred_region
      _
    $region9: #{tpu_custom_call.1} parent=1 // pred_fallthru
      _
    // Predicated region
    $region10: #{tpu_custom_call.1} parent=1 // pred_check
      _
    $region11: #{tpu_custom_call.1} parent=1 // pred_check_branch
      %20 = sbr.rel (0) target = $region13
    $region12: #{tpu_custom_call.1} parent=1 // pred_region
      _
    $region13: #{tpu_custom_call.1} parent=1 // pred_fallthru
      _
    // Predicated region
    $region14: #{tpu_custom_call.1} parent=1 // pred_check
      _
    $region15: #{tpu_custom_call.1} parent=1 // pred_check_branch
      %22 = sbr.rel (0) target = $region17
    $region16: #{tpu_custom_call.1} parent=1 // pred_region
      _
    $region17: #{tpu_custom_call.1} parent=1 // pred_fallthru
      _
    // Predicated region
    $region18: #{tpu_custom_call.1} parent=1 // pred_check
      _
    $region19: #{tpu_custom_call.1} parent=1 // pred_check_branch
      %24 = sbr.rel (0) target = $region21
    $region20: #{tpu_custom_call.1} parent=1 // pred_region
      _
    $region21: #{tpu_custom_call.1} parent=1 // pred_fallthru
      _
    // Predicated region
    $region22: #{tpu_custom_call.1} parent=1 // pred_check
      _
    $region23: #{tpu_custom_call.1} parent=1 // pred_check_branch
      %26 = sbr.rel (0) target = $region25
    $region24: #{tpu_custom_call.1} parent=1 // pred_region
      _
    $region25: #{tpu_custom_call.1} parent=1 // pred_fallthru
      _
    // Predicated region
    $region26: #{tpu_custom_call.1} parent=1 // pred_check
      _
    $region27: #{tpu_custom_call.1} parent=1 // pred_check_branch
      %28 = sbr.rel (0) target = $region29
    $region28: #{tpu_custom_call.1} parent=1 // pred_region
      _
    $region29: #{tpu_custom_call.1} parent=1 // pred_fallthru
      _
    // Predicated region
    $region30: #{tpu_custom_call.1} parent=1 // pred_check
      _
    $region31: #{tpu_custom_call.1} parent=1 // pred_check_branch
      %30 = sbr.rel (0) target = $region33
    $region32: #{tpu_custom_call.1} parent=1 // pred_region
      _
    $region33: #{tpu_custom_call.1} parent=1 // pred_fallthru
      _
    // Predicated region
    $region34: #{tpu_custom_call.1} parent=1 // pred_check
      _
    $region35: #{tpu_custom_call.1} parent=1 // pred_check_branch
      %32 = sbr.rel (0) target = $region37
    $region36: #{tpu_custom_call.1} parent=1 // pred_region
      _
    $region37: #{tpu_custom_call.1} parent=1 // pred_fallthru
      _
    %v33 = vld [vmem:[%s0] sm:$0xff]
    %v34 = vld [vmem:[%s0 + $0x8] sm:$0xff]
    %v35 = vld [vmem:[%s1] sm:$0xff]
    %v36 = vld [vmem:[%s2] sm:$0xff]
    %38 = vset.pattern.permute.xlu0 0
    %39 = vperm.xlu0 %38, %v36
    %v40 = vpop.permute.xlu0 %39
    %vm42 = vcmask 64512
    %v44 = vsel %vm42, %v35, 0
    %46 = vmatprep.subr.mxu0 %v34
    %47 = vmatpush1.msra.mxu0 %v33
    %48 = vmatprep.subr.mxu0 0.0
    %49 = vmatpush1.msra.mxu0 0.0
    %50 = vmatprep.subr.mxu0 0.0
    %51 = vmatpush1.msra.mxu0 0.0
    %52 = vmatprep.subr.mxu0 0.0
    %53 = vmatpush1.msra.mxu0 0.0
    %54 = vmatprep.subr.mxu0 0.0
    %55 = vmatpush1.msra.mxu0 0.0
    %56 = vmatprep.subr.mxu0 0.0
    %57 = vmatpush1.msra.mxu0 0.0
    %58 = vmatprep.subr.mxu0 0.0
    %59 = vmatpush1.msra.mxu0 0.0
    %60 = vmatprep.subr.mxu0 0.0
    %61 = vmatpush1.msra.mxu0 0.0
    %62 = vmatprep.subr.mxu0 0.0
    %63 = vmatpush1.msra.mxu0 0.0
    %64 = vmatprep.subr.mxu0 0.0
    %65 = vmatpush1.msra.mxu0 0.0
    %66 = vmatprep.subr.mxu0 0.0
    %67 = vmatpush1.msra.mxu0 0.0
    %68 = vmatprep.subr.mxu0 0.0
    %69 = vmatpush1.msra.mxu0 0.0
    %70 = vmatprep.subr.mxu0 0.0
    %71 = vmatpush1.msra.mxu0 0.0
    %72 = vmatprep.subr.mxu0 0.0
    %73 = vmatpush1.msra.mxu0 0.0
    %74 = vmatprep.subr.mxu0 0.0
    %75 = vmatpush1.msra.mxu0 0.0
    %76 = vmatprep.subr.mxu0 0.0
    %77 = vmatpush1.msra.mxu0 0.0
    %78 = vmatprep.subr.mxu0 0.0
    %79 = vmatpush1.msra.mxu0 0.0
    %80 = vmatprep.subr.mxu0 0.0
    %81 = vmatpush1.msra.mxu0 0.0
    %82 = vmatprep.subr.mxu0 0.0
    %83 = vmatpush1.msra.mxu0 0.0
    %84 = vmatprep.subr.mxu0 0.0
    %85 = vmatpush1.msra.mxu0 0.0
    %86 = vmatprep.subr.mxu0 0.0
    %87 = vmatpush1.msra.mxu0 0.0
    %88 = vmatprep.subr.mxu0 0.0
    %89 = vmatpush1.msra.mxu0 0.0
    %90 = vmatprep.subr.mxu0 0.0
    %91 = vmatpush1.msra.mxu0 0.0
    %92 = vmatprep.subr.mxu0 0.0
    %93 = vmatpush1.msra.mxu0 0.0
    %94 = vmatprep.subr.mxu0 0.0
    %95 = vmatpush1.msra.mxu0 0.0
    %96 = vmatprep.subr.mxu0 0.0
    %97 = vmatpush1.msra.mxu0 0.0
    %98 = vmatprep.subr.mxu0 0.0
    %99 = vmatpush1.msra.mxu0 0.0
    %100 = vmatprep.subr.mxu0 0.0
    %101 = vmatpush1.msra.mxu0 0.0
    %102 = vmatprep.subr.mxu0 0.0
    %103 = vmatpush1.msra.mxu0 0.0
    %104 = vmatprep.subr.mxu0 0.0
    %105 = vmatpush1.msra.mxu0 0.0
    %106 = vmatprep.subr.mxu0 0.0
    %107 = vmatpush1.msra.mxu0 0.0
    %108 = vmatprep.subr.mxu0 0.0
    %109 = vmatpush1.msra.mxu0 0.0
    %110 = vmatprep.mubr.f32.mxu0 0.0
    %111 = vmatmul.mubr.f32.gmra.mrb[0].mxu0 %v44
    %v112 = vpop.f32.mrb[0].mxu0
    %v113 = vadd.f32 %v40, %v112
    %v114 = vpop.f32.mrb[0].mxu0
    %v115 = vadd.f32 %v40, %v114
    %116 = vdwg.mxu0
    %v117 = vmax.f32 %v113, 0.0
    %v118 = vmax.f32 %v115, 0.0
    %v119 = vlaneseq
    %v120 = vand.u32 %v119, 127
    %v121 = vadd.s32 %v120, 128
    %v122 = vshra.s32 %v120, 4
    %v123 = vshra.s32 %v121, 4
    %v124 = vand.u32 %v120, 15
    %v125 = vand.u32 %v121, 15
    %vm126 = vcmp.ge.s32.totalorder %v122, 1
    %vm127 = vcmp.ge.s32.totalorder %v123, 1
    %128 = vrot.lane.b32.xlu0 %v117, 16
    %v129 = vpop.permute.xlu0 %128
    %130 = vrot.lane.b32.xlu0 %v118, 16
    %v131 = vpop.permute.xlu0 %130
    %vm132 = vcmp.lt.s32.totalorder %v120, 16
    %v133 = vsel %vm132, %v129, %v131
    %v134 = vsel %vm132, %v131, %v129
    %v135 = vsel %vm126, %v134, -1e+30
    %v136 = vsel %vm127, %v133, -1e+30
    %v137 = vmax.f32 %v117, %v135
    %v138 = vmax.f32 %v118, %v136
    %vm139 = vcmp.le.s32.totalorder %v122, 14
    %vm140 = vcmp.le.s32.totalorder %v123, 14
    %141 = vrot.lane.b32.xlu0 %v117, 112
    %v142 = vpop.permute.xlu0 %141
    %143 = vrot.lane.b32.xlu0 %v118, 112
    %v144 = vpop.permute.xlu0 %143
    %vm145 = vcmp.lt.s32.totalorder %v120, 112
    %v146 = vsel %vm145, %v142, %v144
    %v147 = vsel %vm145, %v144, %v142
    %v148 = vsel %vm139, %v146, -1e+30
    %v149 = vsel %vm140, %v147, -1e+30
    %v150 = vmax.f32 %v137, %v148
    %v151 = vmax.f32 %v138, %v149
    %vm152 = vcmp.ge.s32.totalorder %v124, 1
    %vm153 = vcmp.ge.s32.totalorder %v125, 1
    %154 = vrot.lane.b32.xlu0 %v150, 1
    %v155 = vpop.permute.xlu0 %154
    %156 = vrot.lane.b32.xlu0 %v151, 1
    %v157 = vpop.permute.xlu0 %156
    %vm158 = vcmp.lt.s32.totalorder %v120, 1
    %v159 = vsel %vm158, %v155, %v157
    %v160 = vsel %vm158, %v157, %v155
    %v161 = vsel %vm152, %v160, -1e+30
    %v162 = vsel %vm153, %v159, -1e+30
    %v163 = vmax.f32 %v150, %v161
    %v164 = vmax.f32 %v151, %v162
    %vm165 = vcmp.le.s32.totalorder %v124, 14
    %vm166 = vcmp.le.s32.totalorder %v125, 14
    %167 = vrot.lane.b32.xlu0 %v150, 127
    %v168 = vpop.permute.xlu0 %167
    %169 = vrot.lane.b32.xlu0 %v151, 127
    %v170 = vpop.permute.xlu0 %169
    %vm171 = vcmp.lt.s32.totalorder %v120, 127
    %v172 = vsel %vm171, %v168, %v170
    %v173 = vsel %vm171, %v170, %v168
    %v174 = vsel %vm165, %v172, -1e+30
    %v175 = vsel %vm166, %v173, -1e+30
    %v176 = vmax.f32 %v163, %v174
    %v177 = vmax.f32 %v164, %v175
    %v178 = vld [vmem:[%s7] sm:$0xff]
    %v179 = vld [vmem:[%s7 + $0x8] sm:$0xff]
    %v180 = vld [vmem:[%s7 + $0x10] sm:$0xff]
    %v181 = vld [vmem:[%s7 + $0x18] sm:$0xff]
    %v182 = vld [vmem:[%s7 + $0x20] sm:$0xff]
    %v183 = vld [vmem:[%s7 + $0x28] sm:$0xff]
    %v184 = vld [vmem:[%s7 + $0x30] sm:$0xff]
    %v185 = vld [vmem:[%s7 + $0x38] sm:$0xff]
    %v186 = vld [vmem:[%s7 + $0x40] sm:$0xff]
    %v187 = vld [vmem:[%s7 + $0x48] sm:$0xff]
    %v188 = vld [vmem:[%s7 + $0x50] sm:$0xff]
    %v189 = vld [vmem:[%s7 + $0x58] sm:$0xff]
    %v190 = vld [vmem:[%s7 + $0x60] sm:$0xff]
    %v191 = vld [vmem:[%s7 + $0x68] sm:$0xff]
    %v192 = vld [vmem:[%s7 + $0x70] sm:$0xff]
    %v193 = vld [vmem:[%s7 + $0x78] sm:$0xff]
    %v194 = vld [vmem:[%s7 + $0x80] sm:$0xff]
    %v195 = vld [vmem:[%s7 + $0x88] sm:$0xff]
    %v196 = vld [vmem:[%s7 + $0x90] sm:$0xff]
    %v197 = vld [vmem:[%s7 + $0x98] sm:$0xff]
    %v198 = vld [vmem:[%s7 + $0xa0] sm:$0xff]
    %v199 = vld [vmem:[%s7 + $0xa8] sm:$0xff]
    %v200 = vld [vmem:[%s7 + $0xb0] sm:$0xff]
    %v201 = vld [vmem:[%s7 + $0xb8] sm:$0xff]
    %v202 = vld [vmem:[%s7 + $0xc0] sm:$0xff]
    %v203 = vld [vmem:[%s7 + $0xc8] sm:$0xff]
    %v204 = vld [vmem:[%s7 + $0xd0] sm:$0xff]
    %v205 = vld [vmem:[%s7 + $0xd8] sm:$0xff]
    %v206 = vld [vmem:[%s7 + $0xe0] sm:$0xff]
    %v207 = vld [vmem:[%s7 + $0xe8] sm:$0xff]
    %v208 = vld [vmem:[%s7 + $0xf0] sm:$0xff]
    %v209 = vld [vmem:[%s7 + $0xf8] sm:$0xff]
    %210 = vmatprep.subr.mxu0 0.0
    %211 = vmatpush1.msra.mxu0 %v178
    %212 = vmatprep.subr.mxu0 0.0
    %213 = vmatpush1.msra.mxu0 %v179
    %214 = vmatprep.subr.mxu0 0.0
    %215 = vmatpush1.msra.mxu0 %v180
    %216 = vmatprep.subr.mxu0 0.0
    %217 = vmatpush1.msra.mxu0 %v181
    %218 = vmatprep.subr.mxu0 0.0
    %219 = vmatpush1.msra.mxu0 %v182
    %220 = vmatprep.subr.mxu0 0.0
    %221 = vmatpush1.msra.mxu0 %v183
    %222 = vmatprep.subr.mxu0 0.0
    %223 = vmatpush1.msra.mxu0 %v184
    %224 = vmatprep.subr.mxu0 0.0
    %225 = vmatpush1.msra.mxu0 %v185
    %226 = vmatprep.subr.mxu0 0.0
    %227 = vmatpush1.msra.mxu0 %v186
    %228 = vmatprep.subr.mxu0 0.0
    %229 = vmatpush1.msra.mxu0 %v187
    %230 = vmatprep.subr.mxu0 0.0
    %231 = vmatpush1.msra.mxu0 %v188
    %232 = vmatprep.subr.mxu0 0.0
    %233 = vmatpush1.msra.mxu0 %v189
    %234 = vmatprep.subr.mxu0 0.0
    %235 = vmatpush1.msra.mxu0 %v190
    %236 = vmatprep.subr.mxu0 0.0
    %237 = vmatpush1.msra.mxu0 %v191
    %238 = vmatprep.subr.mxu0 0.0
    %239 = vmatpush1.msra.mxu0 %v192
    %240 = vmatprep.subr.mxu0 0.0
    %241 = vmatpush1.msra.mxu0 %v193
    %242 = vmatprep.subr.mxu0 0.0
    %243 = vmatpush1.msra.mxu0 %v194
    %244 = vmatprep.subr.mxu0 0.0
    %245 = vmatpush1.msra.mxu0 %v195
    %246 = vmatprep.subr.mxu0 0.0
    %247 = vmatpush1.msra.mxu0 %v196
    %248 = vmatprep.subr.mxu0 0.0
    %249 = vmatpush1.msra.mxu0 %v197
    %250 = vmatprep.subr.mxu0 0.0
    %251 = vmatpush1.msra.mxu0 %v198
    %252 = vmatprep.subr.mxu0 0.0
    %253 = vmatpush1.msra.mxu0 %v199
    %254 = vmatprep.subr.mxu0 0.0
    %255 = vmatpush1.msra.mxu0 %v200
    %256 = vmatprep.subr.mxu0 0.0
    %257 = vmatpush1.msra.mxu0 %v201
    %258 = vmatprep.subr.mxu0 0.0
    %259 = vmatpush1.msra.mxu0 %v202
    %260 = vmatprep.subr.mxu0 0.0
    %261 = vmatpush1.msra.mxu0 %v203
    %262 = vmatprep.subr.mxu0 0.0
    %263 = vmatpush1.msra.mxu0 %v204
    %264 = vmatprep.subr.mxu0 0.0
    %265 = vmatpush1.msra.mxu0 %v205
    %266 = vmatprep.subr.mxu0 0.0
    %267 = vmatpush1.msra.mxu0 %v206
    %268 = vmatprep.subr.mxu0 0.0
    %269 = vmatpush1.msra.mxu0 %v207
    %270 = vmatprep.subr.mxu0 0.0
    %271 = vmatpush1.msra.mxu0 %v208
    %272 = vmatprep.subr.mxu0 0.0
    %273 = vmatpush1.msra.mxu0 %v209
    %274 = vmatprep.mubr.f32.mxu0 %v177
    %275 = vmatmul.mubr.f32.gmra.mrb[0].mxu0 %v176
    %v276 = vpop.f32.mrb[0].mxu0
    %v277 = vadd.f32 0.0, %v276
    %v278 = vpop.f32.mrb[0].mxu0
    %279 = vdwg.mxu0
    %v280 = vshra.s32 %v120, 3
    %v281 = vand.u32 %v120, 7
    %vm282 = vcmp.ge.s32.totalorder %v280, 1
    %vm283 = vcmp.le.s32.totalorder %v280, 6
    %vm284 = vcmp.ge.s32.totalorder %v281, 1
    %vm285 = vcmp.le.s32.totalorder %v281, 6
    %vm286 = vmand %vm282, %vm284
    %vm287 = vcmask 1048064
    %288 = vrot.lane.b32.xlu0 %v277, 64
    %v289 = vpop.permute.xlu0 %288
    %v290 = vsel %vm287, %v289, %v277
    %291 = vrot.lane.b32.xlu0 %v290, 64
    %v292 = vpop.permute.xlu0 %291
    %v293 = vsel %vm287, %v292, %v277
    %295 = vrot.lane.b32.xlu0 %v293, 73
    %v296 = vpop.permute.xlu0 %295
    %v298 = vsel %vm286, %v296, 0.0
    %299 = vrot.lane.b32.xlu0 %v293, 72
    %v300 = vpop.permute.xlu0 %299
    %v302 = vsel %vm282, %v300, 0.0
    %vm303 = vmand %vm282, %vm285
    %304 = vrot.lane.b32.xlu0 %v293, 71
    %v305 = vpop.permute.xlu0 %304
    %v307 = vsel %vm303, %v305, 0.0
    %308 = vrot.lane.b32.xlu0 %v293, 65
    %v309 = vpop.permute.xlu0 %308
    %v311 = vsel %vm284, %v309, 0.0
    %312 = vrot.lane.b32.xlu0 %v293, 127
    %v313 = vpop.permute.xlu0 %312
    %v315 = vsel %vm285, %v313, 0.0
    %vm316 = vmand %vm283, %vm284
    %317 = vrot.lane.b32.xlu0 %v293, 121
    %v318 = vpop.permute.xlu0 %317
    %v320 = vsel %vm316, %v318, 0.0
    %321 = vrot.lane.b32.xlu0 %v293, 120
    %v322 = vpop.permute.xlu0 %321
    %v324 = vsel %vm283, %v322, 0.0
    %vm325 = vmand %vm283, %vm285
    %326 = vrot.lane.b32.xlu0 %v293, 119
    %v327 = vpop.permute.xlu0 %326
    %v329 = vsel %vm325, %v327, 0.0
    %v330 = vld [vmem:[%s3] sm:$0xff]
    %v331 = vld [vmem:[%s4] sm:$0xff]
    %333 = vset.pattern.permute.xlu0 0
    %334 = vperm.xlu0 %333, %v331
    %v335 = vpop.permute.xlu0 %334
    %vm337 = vcmask 588800
    %v339 = vsel %vm337, %v330, 0
    %341 = vmatprep.subr.mxu0 0.0
    %342 = vmatpush1.msra.mxu0 %v298
    %343 = vmatprep.subr.mxu0 0.0
    %344 = vmatpush1.msra.mxu0 %v302
    %345 = vmatprep.subr.mxu0 0.0
    %346 = vmatpush1.msra.mxu0 %v307
    %347 = vmatprep.subr.mxu0 0.0
    %348 = vmatpush1.msra.mxu0 %v311
    %349 = vmatprep.subr.mxu0 0.0
    %350 = vmatpush1.msra.mxu0 %v277
    %351 = vmatprep.subr.mxu0 0.0
    %352 = vmatpush1.msra.mxu0 %v315
    %353 = vmatprep.subr.mxu0 0.0
    %354 = vmatpush1.msra.mxu0 %v320
    %355 = vmatprep.subr.mxu0 0.0
    %356 = vmatpush1.msra.mxu0 %v324
    %357 = vmatprep.subr.mxu0 0.0
    %358 = vmatpush1.msra.mxu0 %v329
    %359 = vmatprep.subr.mxu0 0.0
    %360 = vmatpush1.msra.mxu0 0.0
    %361 = vmatprep.subr.mxu0 0.0
    %362 = vmatpush1.msra.mxu0 0.0
    %363 = vmatprep.subr.mxu0 0.0
    %364 = vmatpush1.msra.mxu0 0.0
    %365 = vmatprep.subr.mxu0 0.0
    %366 = vmatpush1.msra.mxu0 0.0
    %367 = vmatprep.subr.mxu0 0.0
    %368 = vmatpush1.msra.mxu0 0.0
    %369 = vmatprep.subr.mxu0 0.0
    %370 = vmatpush1.msra.mxu0 0.0
    %371 = vmatprep.subr.mxu0 0.0
    %372 = vmatpush1.msra.mxu0 0.0
    %373 = vmatprep.subr.mxu0 0.0
    %374 = vmatpush1.msra.mxu0 0.0
    %375 = vmatprep.subr.mxu0 0.0
    %376 = vmatpush1.msra.mxu0 0.0
    %377 = vmatprep.subr.mxu0 0.0
    %378 = vmatpush1.msra.mxu0 0.0
    %379 = vmatprep.subr.mxu0 0.0
    %380 = vmatpush1.msra.mxu0 0.0
    %381 = vmatprep.subr.mxu0 0.0
    %382 = vmatpush1.msra.mxu0 0.0
    %383 = vmatprep.subr.mxu0 0.0
    %384 = vmatpush1.msra.mxu0 0.0
    %385 = vmatprep.subr.mxu0 0.0
    %386 = vmatpush1.msra.mxu0 0.0
    %387 = vmatprep.subr.mxu0 0.0
    %388 = vmatpush1.msra.mxu0 0.0
    %389 = vmatprep.subr.mxu0 0.0
    %390 = vmatpush1.msra.mxu0 0.0
    %391 = vmatprep.subr.mxu0 0.0
    %392 = vmatpush1.msra.mxu0 0.0
    %393 = vmatprep.subr.mxu0 0.0
    %394 = vmatpush1.msra.mxu0 0.0
    %395 = vmatprep.subr.mxu0 0.0
    %396 = vmatpush1.msra.mxu0 0.0
    %397 = vmatprep.subr.mxu0 0.0
    %398 = vmatpush1.msra.mxu0 0.0
    %399 = vmatprep.subr.mxu0 0.0
    %400 = vmatpush1.msra.mxu0 0.0
    %401 = vmatprep.subr.mxu0 0.0
    %402 = vmatpush1.msra.mxu0 0.0
    %403 = vmatprep.subr.mxu0 0.0
    %404 = vmatpush1.msra.mxu0 0.0
    %405 = vmatprep.mubr.f32.mxu0 0.0
    %406 = vmatmul.mubr.f32.gmra.mrb[0].mxu0 %v339
    %v407 = vpop.f32.mrb[0].mxu0
    %v408 = vadd.f32 %v335, %v407
    %v409 = vpop.f32.mrb[0].mxu0
    %410 = vdwg.mxu0
    %v411 = vmax.f32 %v408, 0.0
    %v412 = vld [vmem:[%s8] sm:$0xff]
    %v413 = vld [vmem:[%s8 + $0x8] sm:$0xff]
    %v414 = vld [vmem:[%s8 + $0x10] sm:$0xff]
    %v415 = vld [vmem:[%s8 + $0x18] sm:$0xff]
    %v416 = vld [vmem:[%s8 + $0x20] sm:$0xff]
    %v417 = vld [vmem:[%s8 + $0x28] sm:$0xff]
    %v418 = vld [vmem:[%s8 + $0x30] sm:$0xff]
    %v419 = vld [vmem:[%s8 + $0x38] sm:$0xff]
    %v420 = vld [vmem:[%s8 + $0x40] sm:$0xff]
    %v421 = vld [vmem:[%s8 + $0x48] sm:$0xff]
    %v422 = vld [vmem:[%s8 + $0x50] sm:$0xff]
    %v423 = vld [vmem:[%s8 + $0x58] sm:$0xff]
    %v424 = vld [vmem:[%s8 + $0x60] sm:$0xff]
    %v425 = vld [vmem:[%s8 + $0x68] sm:$0xff]
    %v426 = vld [vmem:[%s8 + $0x70] sm:$0xff]
    %v427 = vld [vmem:[%s8 + $0x78] sm:$0xff]
    %vm428 = vcmask 523264
    %v430 = vsel %vm428, %v411, 0
    %432 = vmatprep.subr.mxu0 %v413
    %433 = vmatpush1.msra.mxu0 %v412
    %434 = vmatprep.subr.mxu0 %v415
    %435 = vmatpush1.msra.mxu0 %v414
    %436 = vmatprep.subr.mxu0 %v417
    %437 = vmatpush1.msra.mxu0 %v416
    %438 = vmatprep.subr.mxu0 %v419
    %439 = vmatpush1.msra.mxu0 %v418
    %440 = vmatprep.subr.mxu0 %v421
    %441 = vmatpush1.msra.mxu0 %v420
    %442 = vmatprep.subr.mxu0 %v423
    %443 = vmatpush1.msra.mxu0 %v422
    %444 = vmatprep.subr.mxu0 %v425
    %445 = vmatpush1.msra.mxu0 %v424
    %446 = vmatprep.subr.mxu0 %v427
    %447 = vmatpush1.msra.mxu0 %v426
    %448 = vmatprep.subr.mxu0 0.0
    %449 = vmatpush1.msra.mxu0 0.0
    %450 = vmatprep.subr.mxu0 0.0
    %451 = vmatpush1.msra.mxu0 0.0
    %452 = vmatprep.subr.mxu0 0.0
    %453 = vmatpush1.msra.mxu0 0.0
    %454 = vmatprep.subr.mxu0 0.0
    %455 = vmatpush1.msra.mxu0 0.0
    %456 = vmatprep.subr.mxu0 0.0
    %457 = vmatpush1.msra.mxu0 0.0
    %458 = vmatprep.subr.mxu0 0.0
    %459 = vmatpush1.msra.mxu0 0.0
    %460 = vmatprep.subr.mxu0 0.0
    %461 = vmatpush1.msra.mxu0 0.0
    %462 = vmatprep.subr.mxu0 0.0
    %463 = vmatpush1.msra.mxu0 0.0
    %464 = vmatprep.subr.mxu0 0.0
    %465 = vmatpush1.msra.mxu0 0.0
    %466 = vmatprep.subr.mxu0 0.0
    %467 = vmatpush1.msra.mxu0 0.0
    %468 = vmatprep.subr.mxu0 0.0
    %469 = vmatpush1.msra.mxu0 0.0
    %470 = vmatprep.subr.mxu0 0.0
    %471 = vmatpush1.msra.mxu0 0.0
    %472 = vmatprep.subr.mxu0 0.0
    %473 = vmatpush1.msra.mxu0 0.0
    %474 = vmatprep.subr.mxu0 0.0
    %475 = vmatpush1.msra.mxu0 0.0
    %476 = vmatprep.subr.mxu0 0.0
    %477 = vmatpush1.msra.mxu0 0.0
    %478 = vmatprep.subr.mxu0 0.0
    %479 = vmatpush1.msra.mxu0 0.0
    %480 = vmatprep.subr.mxu0 0.0
    %481 = vmatpush1.msra.mxu0 0.0
    %482 = vmatprep.subr.mxu0 0.0
    %483 = vmatpush1.msra.mxu0 0.0
    %484 = vmatprep.subr.mxu0 0.0
    %485 = vmatpush1.msra.mxu0 0.0
    %486 = vmatprep.subr.mxu0 0.0
    %487 = vmatpush1.msra.mxu0 0.0
    %488 = vmatprep.subr.mxu0 0.0
    %489 = vmatpush1.msra.mxu0 0.0
    %490 = vmatprep.subr.mxu0 0.0
    %491 = vmatpush1.msra.mxu0 0.0
    %492 = vmatprep.subr.mxu0 0.0
    %493 = vmatpush1.msra.mxu0 0.0
    %494 = vmatprep.subr.mxu0 0.0
    %495 = vmatpush1.msra.mxu0 0.0
    %496 = vmatprep.mubr.f32.mxu0 0.0
    %497 = vmatmul.mubr.f32.gmra.mrb[0].mxu0 %v430
    %v498 = vpop.f32.mrb[0].mxu0
    %v499 = vadd.f32 0.0, %v498
    %v500 = vpop.f32.mrb[0].mxu0
    %v501 = vadd.f32 0.0, %v500
    %502 = vdwg.mxu0
    %v503 = vld [vmem:[%s5] sm:$0xff]
    %v504 = vld [vmem:[%s5 + $0x8] sm:$0xff]
    %v505 = vld [vmem:[%s6] sm:$0xff]
    %v506 = vld [vmem:[%s6 + $0x8] sm:$0xff]
    %508 = vset.pattern.permute.xlu0 0
    %509 = vperm.xlu0 %508, %v505
    %v510 = vpop.permute.xlu0 %509
    %513 = vset.pattern.permute.xlu0 0
    %514 = vperm.xlu0 %513, %v506
    %v515 = vpop.permute.xlu0 %514
    %v518 = vsel %vm42, %v503, 0
    %v521 = vsel %vm42, %v504, 0
    %523 = vmatprep.subr.mxu0 %v501
    %524 = vmatpush1.msra.mxu0 %v499
    %525 = vmatprep.subr.mxu0 0.0
    %526 = vmatpush1.msra.mxu0 0.0
    %527 = vmatprep.subr.mxu0 0.0
    %528 = vmatpush1.msra.mxu0 0.0
    %529 = vmatprep.subr.mxu0 0.0
    %530 = vmatpush1.msra.mxu0 0.0
    %531 = vmatprep.subr.mxu0 0.0
    %532 = vmatpush1.msra.mxu0 0.0
    %533 = vmatprep.subr.mxu0 0.0
    %534 = vmatpush1.msra.mxu0 0.0
    %535 = vmatprep.subr.mxu0 0.0
    %536 = vmatpush1.msra.mxu0 0.0
    %537 = vmatprep.subr.mxu0 0.0
    %538 = vmatpush1.msra.mxu0 0.0
    %539 = vmatprep.subr.mxu0 0.0
    %540 = vmatpush1.msra.mxu0 0.0
    %541 = vmatprep.subr.mxu0 0.0
    %542 = vmatpush1.msra.mxu0 0.0
    %543 = vmatprep.subr.mxu0 0.0
    %544 = vmatpush1.msra.mxu0 0.0
    %545 = vmatprep.subr.mxu0 0.0
    %546 = vmatpush1.msra.mxu0 0.0
    %547 = vmatprep.subr.mxu0 0.0
    %548 = vmatpush1.msra.mxu0 0.0
    %549 = vmatprep.subr.mxu0 0.0
    %550 = vmatpush1.msra.mxu0 0.0
    %551 = vmatprep.subr.mxu0 0.0
    %552 = vmatpush1.msra.mxu0 0.0
    %553 = vmatprep.subr.mxu0 0.0
    %554 = vmatpush1.msra.mxu0 0.0
    %555 = vmatprep.subr.mxu0 0.0
    %556 = vmatpush1.msra.mxu0 0.0
    %557 = vmatprep.subr.mxu0 0.0
    %558 = vmatpush1.msra.mxu0 0.0
    %559 = vmatprep.subr.mxu0 0.0
    %560 = vmatpush1.msra.mxu0 0.0
    %561 = vmatprep.subr.mxu0 0.0
    %562 = vmatpush1.msra.mxu0 0.0
    %563 = vmatprep.subr.mxu0 0.0
    %564 = vmatpush1.msra.mxu0 0.0
    %565 = vmatprep.subr.mxu0 0.0
    %566 = vmatpush1.msra.mxu0 0.0
    %567 = vmatprep.subr.mxu0 0.0
    %568 = vmatpush1.msra.mxu0 0.0
    %569 = vmatprep.subr.mxu0 0.0
    %570 = vmatpush1.msra.mxu0 0.0
    %571 = vmatprep.subr.mxu0 0.0
    %572 = vmatpush1.msra.mxu0 0.0
    %573 = vmatprep.subr.mxu0 0.0
    %574 = vmatpush1.msra.mxu0 0.0
    %575 = vmatprep.subr.mxu0 0.0
    %576 = vmatpush1.msra.mxu0 0.0
    %577 = vmatprep.subr.mxu0 0.0
    %578 = vmatpush1.msra.mxu0 0.0
    %579 = vmatprep.subr.mxu0 0.0
    %580 = vmatpush1.msra.mxu0 0.0
    %581 = vmatprep.subr.mxu0 0.0
    %582 = vmatpush1.msra.mxu0 0.0
    %583 = vmatprep.subr.mxu0 0.0
    %584 = vmatpush1.msra.mxu0 0.0
    %585 = vmatprep.subr.mxu0 0.0
    %586 = vmatpush1.msra.mxu0 0.0
    %587 = vmatprep.mubr.f32.mxu0 0.0
    %588 = vmatmul.mubr.f32.gmra.mrb[0].mxu0 %v518
    %v589 = vpop.f32.mrb[0].mxu0
    %v590 = vadd.f32 %v510, %v589
    %v591 = vpop.f32.mrb[0].mxu0
    %v592 = vadd.f32 %v510, %v591
    %593 = vmatprep.mubr.f32.mxu0 0.0
    %594 = vmatmul.mubr.f32.gmra.mrb[0].mxu0 %v521
    %v595 = vpop.f32.mrb[0].mxu0
    %v596 = vadd.f32 %v515, %v595
    %v597 = vpop.f32.mrb[0].mxu0
    %v598 = vadd.f32 %v515, %v597
    %599 = vdwg.mxu0
    %v600 = vxor.u32 %v590, 2147483648
    %v601 = vxor.u32 %v592, 2147483648
    %v602 = vxor.u32 %v596, 2147483648
    %v603 = vxor.u32 %v598, 2147483648
    %v604 = vmul.f32 %v600, 1.442695
    %v605 = vpow.pop %v604
    %v606 = vmul.f32 %v601, 1.442695
    %v607 = vpow.pop %v606
    %v608 = vmul.f32 %v602, 1.442695
    %v609 = vpow.pop %v608
    %v610 = vmul.f32 %v603, 1.442695
    %v611 = vpow.pop %v610
    %v612 = vadd.f32 %v605, 1.0
    %v613 = vadd.f32 %v607, 1.0
    %v614 = vadd.f32 %v609, 1.0
    %v615 = vadd.f32 %v611, 1.0
    %v616 = vrcp.pop %v612
    %v617 = vmul.f32 1.0, %v616
    %v618 = vrcp.pop %v613
    %v619 = vmul.f32 1.0, %v618
    %v620 = vrcp.pop %v614
    %v621 = vmul.f32 1.0, %v620
    %v622 = vrcp.pop %v615
    %v623 = vmul.f32 1.0, %v622
    %624 = vst [vmem:[#allocation2] sm:$0xff] %v617
    %625 = vst [vmem:[#allocation2 + $0x8] sm:$0xff] %v619
    %626 = vst [vmem:[#allocation2 + $0x10] sm:$0xff] %v621
    %627 = vst [vmem:[#allocation2 + $0x18] sm:$0xff] %v623
    // Predicated region
    $region38: #{tpu_custom_call.1} parent=1 // pred_check
      _
    $region39: #{tpu_custom_call.1} parent=1 // pred_check_branch
      %629 = sbr.rel (0) target = $region41
    $region40: #{tpu_custom_call.1} parent=1 // pred_region
      %s631 = ssub.s32 512, 512
      %632 = vsyncadd [#allocation3], %s631
      %s633 = sshll.u32 [#allocation2], 4
      %s634 = int_to_ptr.vmem [resolvable:$true] %s633
      %639 = dma.vmem_to_hbm [thread:$0]  %s634, 512, %s9, [#allocation3], 256, 256, 16
    $region41: #{tpu_custom_call.1} parent=1 // pred_fallthru
      _
    // Predicated region
    $region42: #{tpu_custom_call.1} parent=1 // pred_check
      _
    $region43: #{tpu_custom_call.1} parent=1 // pred_check_branch
      %641 = sbr.rel (0) target = $region45
    $region44: #{tpu_custom_call.1} parent=1 // pred_region
      %642 = dma.done [#allocation3], 512
    $region45: #{tpu_custom_call.1} parent=1 // pred_fallthru
      _
    %643 = vsyncpa [#allocation3], 1

</llo_original>
